<compile_context>
chip_gen: v6e
topology: v6e:2x2x1
jax: 0.10.0
libtpu: 0.0.40
codegen_flags: <defaults>
</compile_context>

<pallas_src>
import functools

import jax
import jax.numpy as jnp
from jax import lax
from jax.experimental import pallas as pl
from jax.experimental.pallas import tpu as pltpu

BN_EPS = 1e-5
_INV_SQRT2 = 0.7071067811865476
_VMEM_LIMIT = 48 * 1024 * 1024      # < v7x 64 MiB physical, generous on v5e/v6e


def _gelu_exact(x):
    # Exact (erf) GELU, matching F.gelu's default.
    return 0.5 * x * (1.0 + lax.erf(x * _INV_SQRT2))


def _round_up(x, m):
    return (x + m - 1) // m * m


def _choose_tile_l(length, pad, cin, cout, tile_l=None,
                   budget_bytes=6 * 1024 * 1024):
    """L tile: multiple of 8 sublanes, >= 4*pad (halo), VMEM-budgeted."""
    min_t = max(8, _round_up(max(4 * pad, 1), 8))
    if tile_l is not None:
        t = max(min_t, _round_up(tile_l, 8))
    else:
        # f32 bytes per output row resident in phase B (double-buffered input
        # blocks + output block + in-register temporaries), conservative.
        per_row = 4 * (6 * cin + 8 * cout)
        t = max(min_t, (budget_bytes // max(per_row, 1)) // 8 * 8)
    return min(t, max(min_t, _round_up(length, 8)))


def _dilated_taps_matmul(src, w_ref, *, K, d, start, length):
    """sum_k src[start+k*d : start+k*d+length, :] @ w[k]  (f32 acc on MXU).

    src:   (S, Cin) f32 value with S >= start + (K-1)*d + length.
    w_ref: (K, Cin, Cout) f32 ref.
    """
    Cout = w_ref.shape[2]
    acc = jnp.zeros((length, Cout), jnp.float32)
    for k in range(K):
        o = start + k * d
        acc = acc + jnp.dot(src[o:o + length, :], w_ref[k],
                            preferred_element_type=jnp.float32)
    return acc


def _masked_sums(y, row0, limit):
    """Per-channel sum / sum-of-squares of y over rows with row0 + r < limit."""
    rows = y.shape[0]
    r = row0 + lax.broadcasted_iota(jnp.int32, (rows, 1), 0)
    ym = jnp.where(r < limit, y, 0.0)
    s = jnp.sum(ym, axis=0, keepdims=True)          # (1, C)
    q = jnp.sum(ym * ym, axis=0, keepdims=True)     # (1, C)
    return s, q


# --------------------------------------------------------------------------- #
# Phase A: conv1 over tile -> per-tile partial BN1 statistics.
# --------------------------------------------------------------------------- #
def _stats1_kernel(xa_ref, xb_ref, w1_ref, st_ref, *, K, d, p, T, Lc):
    i = pl.program_id(1)
    x2 = jnp.concatenate([xa_ref[...], xb_ref[...]], axis=0)      # (2T, Cin)
    # conv1 rows l = i*T + s, s in [0, T); bias omitted (cancels in BN).
    y1 = _dilated_taps_matmul(x2, w1_ref, K=K, d=d, start=p, length=T)
    s, q = _masked_sums(y1, i * T, Lc)
    st_ref[...] = jnp.concatenate([s, q], axis=0)                 # (2, Cout)


# --------------------------------------------------------------------------- #
# Phase B: conv1 (recomputed over halo) -> BN1 + GELU -> conv2 -> y2 tile +
#          per-tile partial BN2 statistics.
# --------------------------------------------------------------------------- #
def _conv2_stats_kernel(xa_ref, xb_ref, w1_ref, w2_ref, bn1_ref,
                        y2_ref, st_ref, *, K, d, p, T, L, Lc):
    i = pl.program_id(1)
    Text = T + 2 * p
    x2 = jnp.concatenate([xa_ref[...], xb_ref[...]], axis=0)      # (2T, Cin)

    # conv1 recomputed for halo-extended rows m = i*T - p + r, r in [0, Text).
    y1 = _dilated_taps_matmul(x2, w1_ref, K=K, d=d, start=0, length=Text)

    # BN1 as precomputed per-channel scale/shift + exact GELU (all f32).
    h = _gelu_exact(y1 * bn1_ref[0:1, :] + bn1_ref[1:2, :])

    # Zero rows outside [0, L): conv2's same-padding AND PyTorch's
    # "remove last element" trim for even receptive fields (applied before
    # conv2, exactly as SamePadConv.forward does).
    m = (i * T - p) + lax.broadcasted_iota(jnp.int32, (Text, 1), 0)
    h = jnp.where((m >= 0) & (m < L), h, 0.0)

    # conv2 directly from the in-register halo window.
    y2 = _dilated_taps_matmul(h, w2_ref, K=K, d=d, start=0, length=T)
    y2_ref[...] = y2

    s, q = _masked_sums(y2, i * T, Lc)
    st_ref[...] = jnp.concatenate([s, q], axis=0)


# --------------------------------------------------------------------------- #
# Phase C: BN2 + GELU + residual (residual re-read from the padded input).
# --------------------------------------------------------------------------- #
def _finalize_kernel(y2_ref, xa_ref, xb_ref, bn2_ref, out_ref, *, p, T):
    z = _gelu_exact(y2_ref[...] * bn2_ref[0:1, :] + bn2_ref[1:2, :])
    x2 = jnp.concatenate([xa_ref[...], xb_ref[...]], axis=0)
    res = x2[2 * p:2 * p + T, :]            # original x rows of this tile
    out_ref[...] = (z + res).astype(out_ref.dtype)


def _bn_scale_shift(stats, n, gamma, beta):
    """Fold partial sums into BN scale/shift: y_hat = y*scale + shift."""
    s = jnp.sum(stats[:, :, 0, :], axis=(0, 1))
    q = jnp.sum(stats[:, :, 1, :], axis=(0, 1))
    mean = s / n
    var = jnp.maximum(q / n - mean * mean, 0.0)      # biased var (PyTorch train)
    scale = gamma * lax.rsqrt(var + BN_EPS)
    shift = beta - mean * scale
    return jnp.stack([scale, shift], axis=0).astype(jnp.float32)   # (2, C)


def conv_block_pallas(x, params, *, kernel_size, dilation, tile_l=None):
    """x: (B, C, L) float32 (PyTorch NCL).  Returns (B, C, L)."""
    B, Cin, L = x.shape
    K, d = kernel_size, dilation
    rf = (K - 1) * d + 1
    p = rf // 2
    extra = 1 if rf % 2 == 0 else 0       # SamePadConv's trimmed column
    Lc = L + extra                        # conv output length before the trim
    Cout = params["w1"].shape[2]
    assert Cout == Cin, "residual add requires input_dim == output_dim"

    T = _choose_tile_l(Lc, p, Cin, Cout, tile_l=tile_l)
    nT = pl.cdiv(Lc, T)
    Lt = nT * T

    # Single padded channels-last copy of the input.  Front pad = 2*p so every
    # phase's halo window for tile i lies inside blocks [i, i+2); one extra
    # trailing tile makes block i+1 always valid.
    x_blc = jnp.transpose(x, (0, 2, 1)).astype(jnp.float32)           # (B, L, C)
    xp = jnp.pad(x_blc, ((0, 0), (2 * p, (nT + 1) * T - L - 2 * p), (0, 0)))

    # Conv weights tap-major (K, Cin, Cout); biases intentionally unused: a
    # per-channel bias immediately before training-mode BN cancels exactly.
    w1 = params["w1"].astype(jnp.float32)
    w2 = params["w2"].astype(jnp.float32)

    cparams = pltpu.CompilerParams(
        dimension_semantics=("parallel", "parallel"),
        vmem_limit_bytes=_VMEM_LIMIT)

    x_spec_a = pl.BlockSpec((None, T, Cin), lambda b, i: (b, i, 0))
    x_spec_b = pl.BlockSpec((None, T, Cin), lambda b, i: (b, i + 1, 0))
    w1_spec = pl.BlockSpec(w1.shape, lambda b, i: (0, 0, 0))
    w2_spec = pl.BlockSpec(w2.shape, lambda b, i: (0, 0, 0))
    bn_spec = pl.BlockSpec((2, Cout), lambda b, i: (0, 0))
    st_spec = pl.BlockSpec((None, None, 2, Cout), lambda b, i: (b, i, 0, 0))
    st_shape = jax.ShapeDtypeStruct((B, nT, 2, Cout), jnp.float32)
    tile_spec = pl.BlockSpec((None, T, Cout), lambda b, i: (b, i, 0))

    n = float(B * Lc)

    # ---- phase A: conv1 -> per-tile partial BN1 statistics ------------------
    stats1 = pl.pallas_call(
        functools.partial(_stats1_kernel, K=K, d=d, p=p, T=T, Lc=Lc),
        out_shape=st_shape,
        grid=(B, nT),
        in_specs=[x_spec_a, x_spec_b, w1_spec],
        out_specs=st_spec,
        compiler_params=cparams,
    )(xp, xp, w1)
    bn1 = _bn_scale_shift(stats1, n, params["g1"], params["be1"])

    # ---- phase B: conv1 (halo recompute) + BN1 + GELU + conv2 + BN2 stats ---
    y2, stats2 = pl.pallas_call(
        functools.partial(_conv2_stats_kernel, K=K, d=d, p=p, T=T, L=L, Lc=Lc),
        out_shape=(jax.ShapeDtypeStruct((B, Lt, Cout), jnp.float32), st_shape),
        grid=(B, nT),
        in_specs=[x_spec_a, x_spec_b, w1_spec, w2_spec, bn_spec],
        out_specs=(tile_spec, st_spec),
        compiler_params=cparams,
    )(xp, xp, w1, w2, bn1)
    bn2 = _bn_scale_shift(stats2, n, params["g2"], params["be2"])

    # ---- phase C: BN2 + GELU + residual --------------------------------------
    out_blc = pl.pallas_call(
        functools.partial(_finalize_kernel, p=p, T=T),
        out_shape=jax.ShapeDtypeStruct((B, Lt, Cout), jnp.float32),
        grid=(B, nT),
        in_specs=[tile_spec, x_spec_a, x_spec_b, bn_spec],
        out_specs=tile_spec,
        compiler_params=cparams,
    )(y2, xp, xp, bn2)

    # TODO(synk): BatchNorm running_mean/running_var momentum buffer updates are
    # a training side effect and are not materialized by this forward pipeline.
    return jnp.transpose(out_blc[:, :L, :], (0, 2, 1)).astype(x.dtype)


# ----------------------------- pure-JAX reference -----------------------------
def conv_block_reference(x, params, *, kernel_size, dilation):
    rf = (kernel_size - 1) * dilation + 1
    pad = rf // 2

    def samepad(h, w_kic, b, g, be):
        w_oik = jnp.transpose(w_kic, (2, 1, 0))                       # (O, I, K)
        y = lax.conv_general_dilated(
            h, w_oik, window_strides=(1,), padding=[(pad, pad)],
            rhs_dilation=(dilation,),
            dimension_numbers=("NCH", "OIH", "NCH"))
        y = y + b.reshape(1, -1, 1)
        mean = jnp.mean(y, axis=(0, 2), keepdims=True)
        var = jnp.mean((y - mean) ** 2, axis=(0, 2), keepdims=True)
        y = (y - mean) * lax.rsqrt(var + BN_EPS)
        y = y * g.reshape(1, -1, 1) + be.reshape(1, -1, 1)
        y = _gelu_exact(y)
        if rf % 2 == 0:
            y = y[:, :, :-1]
        return y

    h = samepad(x, params["w1"], params["b1"], params["g1"], params["be1"])
    h = samepad(h, params["w2"], params["b2"], params["g2"], params["be2"])
    return h + x


def init_params(key, input_dim, output_dim, kernel_size):
    ks = jax.random.split(key, 8)

    def conv_w(k, cin, cout):
        # stored tap-major: (K, Cin, Cout)
        return 0.3 * jax.random.normal(k, (kernel_size, cin, cout), jnp.float32)

    return {
        "w1": conv_w(ks[0], input_dim, output_dim),
        "b1": 0.1 * jax.random.normal(ks[1], (output_dim,), jnp.float32),
        "g1": 1.0 + 0.1 * jax.random.normal(ks[2], (output_dim,), jnp.float32),
        "be1": 0.1 * jax.random.normal(ks[3], (output_dim,), jnp.float32),
        "w2": conv_w(ks[4], output_dim, output_dim),
        "b2": 0.1 * jax.random.normal(ks[5], (output_dim,), jnp.float32),
        "g2": 1.0 + 0.1 * jax.random.normal(ks[6], (output_dim,), jnp.float32),
        "be2": 0.1 * jax.random.normal(ks[7], (output_dim,), jnp.float32),
    }


if __name__ == "__main__":
    key = jax.random.PRNGKey(0)

    configs = [
        # (B, C, L, kernel_size, dilation, tile_l)
        (2, 4, 37, 3, 2, 8),     # rf=5 (odd): multi-tile, ragged tail
        (2, 4, 19, 4, 1, 8),     # rf=4 (even): PyTorch "remove last" trim
        (2, 8, 40, 5, 1, None),  # rf=5 (odd): auto tile size, single tile
    ]
    for idx, (B, C, L, K, d, tile_l) in enumerate(configs):
        k_x, k_p, key = jax.random.split(key, 3)
        x = jax.random.normal(k_x, (B, C, L), jnp.float32)
        params = init_params(k_p, C, C, K)

        out = conv_block_pallas(x, params, kernel_size=K, dilation=d,
                                tile_l=tile_l)
        out = jax.block_until_ready(out)
        ref = jax.block_until_ready(
            conv_block_reference(x, params, kernel_size=K, dilation=d))

        assert out.shape == (B, C, L)
        err = float(jnp.max(jnp.abs(out - ref)))
        assert jnp.allclose(out, ref, atol=2e-2, rtol=2e-2), (
            f"config {idx}: max abs err {err}")

    print("KERNEL_OK")
</pallas_src>

<mosaic_0001>
module attributes {stable_mosaic.version = 11 : i64} {
  func.func @_stats1_kernel(%arg0: i32, %arg1: i32, %arg2: memref<1x8x4xf32, #tpu.memory_space<vmem>>, %arg3: memref<1x8x4xf32, #tpu.memory_space<vmem>>, %arg4: memref<3x4x4xf32, #tpu.memory_space<vmem>>, %arg5: memref<1x1x2x4xf32, #tpu.memory_space<vmem>>) attributes {dimension_semantics = [#tpu.dimension_semantics<parallel>, #tpu.dimension_semantics<parallel>], iteration_bounds = array<i64: 2, 5>, scalar_prefetch = 0 : i64, scratch_operands = 0 : i64, tpu.core_type = #tpu.core_type<tc>, window_params = [{transform_indices = @transform_0, window_bounds = array<i64: 1, 8, 4>}, {transform_indices = @transform_1, window_bounds = array<i64: 1, 8, 4>}, {pipeline_mode = #tpu.pipeline_mode<synchronous>, transform_indices = @transform_2, window_bounds = array<i64: 3, 4, 4>}, {transform_indices = @transform_3, window_bounds = array<i64: 1, 1, 2, 4>}]} {
    %c0 = arith.constant 0 : index
    %c0_0 = arith.constant 0 : index
    %c0_1 = arith.constant 0 : index
    %0 = vector.load %arg2[%c0, %c0_0, %c0_1] : memref<1x8x4xf32, #tpu.memory_space<vmem>>, vector<1x8x4xf32>
    %1 = vector.shape_cast %0 : vector<1x8x4xf32> to vector<8x4xf32>
    %c0_2 = arith.constant 0 : index
    %c0_3 = arith.constant 0 : index
    %c0_4 = arith.constant 0 : index
    %2 = vector.load %arg3[%c0_2, %c0_3, %c0_4] : memref<1x8x4xf32, #tpu.memory_space<vmem>>, vector<1x8x4xf32>
    %3 = vector.shape_cast %2 : vector<1x8x4xf32> to vector<8x4xf32>
    %4 = tpu.concatenate %1, %3 in 0 : vector<8x4xf32>, vector<8x4xf32> -> vector<16x4xf32>
    %cst = arith.constant 0.000000e+00 : f32
    %5 = vector.broadcast %cst : f32 to vector<8x4xf32>
    %6 = vector.extract_strided_slice %4 {offsets = [2, 0], sizes = [8, 4], strides = [1, 1]} : vector<16x4xf32> to vector<8x4xf32>
    %c0_5 = arith.constant 0 : index
    %c0_6 = arith.constant 0 : index
    %c0_7 = arith.constant 0 : index
    %7 = vector.load %arg4[%c0_5, %c0_6, %c0_7] : memref<3x4x4xf32, #tpu.memory_space<vmem>>, vector<1x4x4xf32>
    %8 = vector.shape_cast %7 : vector<1x4x4xf32> to vector<4x4xf32>
    %cst_8 = arith.constant dense<0.000000e+00> : vector<8x4xf32>
    %9 = tpu.matmul %6, %8, %cst_8 {dimension_numbers = #tpu.dot_dimension_numbers<[1], [0], [0], [1], [0, 0, 1, 1], [], []>} : vector<8x4xf32>, vector<4x4xf32>, vector<8x4xf32> -> vector<8x4xf32>
    %10 = arith.addf %5, %9 : vector<8x4xf32>
    %11 = vector.extract_strided_slice %4 {offsets = [4, 0], sizes = [8, 4], strides = [1, 1]} : vector<16x4xf32> to vector<8x4xf32>
    %c1 = arith.constant 1 : index
    %c0_9 = arith.constant 0 : index
    %c0_10 = arith.constant 0 : index
    %12 = vector.load %arg4[%c1, %c0_9, %c0_10] : memref<3x4x4xf32, #tpu.memory_space<vmem>>, vector<1x4x4xf32>
    %13 = vector.shape_cast %12 : vector<1x4x4xf32> to vector<4x4xf32>
    %cst_11 = arith.constant dense<0.000000e+00> : vector<8x4xf32>
    %14 = tpu.matmul %11, %13, %cst_11 {dimension_numbers = #tpu.dot_dimension_numbers<[1], [0], [0], [1], [0, 0, 1, 1], [], []>} : vector<8x4xf32>, vector<4x4xf32>, vector<8x4xf32> -> vector<8x4xf32>
    %15 = arith.addf %10, %14 : vector<8x4xf32>
    %16 = vector.extract_strided_slice %4 {offsets = [6, 0], sizes = [8, 4], strides = [1, 1]} : vector<16x4xf32> to vector<8x4xf32>
    %c2 = arith.constant 2 : index
    %c0_12 = arith.constant 0 : index
    %c0_13 = arith.constant 0 : index
    %17 = vector.load %arg4[%c2, %c0_12, %c0_13] : memref<3x4x4xf32, #tpu.memory_space<vmem>>, vector<1x4x4xf32>
    %18 = vector.shape_cast %17 : vector<1x4x4xf32> to vector<4x4xf32>
    %cst_14 = arith.constant dense<0.000000e+00> : vector<8x4xf32>
    %19 = tpu.matmul %16, %18, %cst_14 {dimension_numbers = #tpu.dot_dimension_numbers<[1], [0], [0], [1], [0, 0, 1, 1], [], []>} : vector<8x4xf32>, vector<4x4xf32>, vector<8x4xf32> -> vector<8x4xf32>
    %20 = arith.addf %15, %19 : vector<8x4xf32>
    %c8_i32 = arith.constant 8 : i32
    %21 = arith.muli %arg1, %c8_i32 : i32
    %22 = tpu.iota {dimensions = array<i32: 0>} : vector<8x1xi32>
    %23 = vector.broadcast %21 : i32 to vector<8x1xi32>
    %24 = arith.addi %23, %22 : vector<8x1xi32>
    %c37_i32 = arith.constant 37 : i32
    %25 = vector.broadcast %c37_i32 : i32 to vector<8x1xi32>
    %26 = arith.cmpi slt, %24, %25 : vector<8x1xi32>
    %cst_15 = arith.constant 0.000000e+00 : f32
    %27 = vector.shape_cast %26 : vector<8x1xi1> to vector<8x1xi1>
    %28 = vector.broadcast %27 : vector<8x1xi1> to vector<8x4xi1>
    %29 = vector.broadcast %cst_15 : f32 to vector<8x4xf32>
    %30 = arith.select %28, %20, %29 : vector<8x4xi1>, vector<8x4xf32>
    %cst_16 = arith.constant dense<0.000000e+00> : vector<4xf32>
    %31 = vector.multi_reduction <add>, %30, %cst_16 [0] : vector<8x4xf32> to vector<4xf32>
    %32 = vector.shape_cast %31 : vector<4xf32> to vector<1x4xf32>
    %33 = arith.mulf %30, %30 : vector<8x4xf32>
    %cst_17 = arith.constant dense<0.000000e+00> : vector<4xf32>
    %34 = vector.multi_reduction <add>, %33, %cst_17 [0] : vector<8x4xf32> to vector<4xf32>
    %35 = vector.shape_cast %34 : vector<4xf32> to vector<1x4xf32>
    %36 = tpu.concatenate %32, %35 in 0 : vector<1x4xf32>, vector<1x4xf32> -> vector<2x4xf32>
    %c0_18 = arith.constant 0 : index
    %c0_19 = arith.constant 0 : index
    %c0_20 = arith.constant 0 : index
    %c0_21 = arith.constant 0 : index
    %37 = vector.load %arg5[%c0_18, %c0_19, %c0_20, %c0_21] : memref<1x1x2x4xf32, #tpu.memory_space<vmem>>, vector<1x1x2x4xf32>
    %38 = vector.shape_cast %37 : vector<1x1x2x4xf32> to vector<2x4xf32>
    %39 = vector.shape_cast %36 : vector<2x4xf32> to vector<1x1x2x4xf32>
    tpu.vector_store %arg5[%c0_18, %c0_19, %c0_20, %c0_21], %39 {strides = array<i32>} : memref<1x1x2x4xf32, #tpu.memory_space<vmem>>, vector<1x1x2x4xf32>,
    return
  }
  func.func @transform_0(%arg0: i32, %arg1: i32) -> (i32, i32, i32) {
    %c0_i32 = arith.constant 0 : i32
    %c0_i32_0 = arith.constant 0 : i32
    return %arg0, %arg1, %c0_i32 : i32, i32, i32
  }
  func.func @transform_1(%arg0: i32, %arg1: i32) -> (i32, i32, i32) {
    %c1_i32 = arith.constant 1 : i32
    %0 = arith.addi %arg1, %c1_i32 : i32
    %c0_i32 = arith.constant 0 : i32
    %c0_i32_0 = arith.constant 0 : i32
    return %arg0, %0, %c0_i32 : i32, i32, i32
  }
  func.func @transform_2(%arg0: i32, %arg1: i32) -> (i32, i32, i32) {
    %c0_i32 = arith.constant 0 : i32
    %c0_i32_0 = arith.constant 0 : i32
    %c0_i32_1 = arith.constant 0 : i32
    %c0_i32_2 = arith.constant 0 : i32
    return %c0_i32, %c0_i32_0, %c0_i32_1 : i32, i32, i32
  }
  func.func @transform_3(%arg0: i32, %arg1: i32) -> (i32, i32, i32, i32) {
    %c0_i32 = arith.constant 0 : i32
    %c0_i32_0 = arith.constant 0 : i32
    %c0_i32_1 = arith.constant 0 : i32
    return %arg0, %arg1, %c0_i32, %c0_i32_0 : i32, i32, i32, i32
  }
}

</mosaic_0001>

<llo_original>
// kernel: tpu_custom_call.1
$region0: #{tpu_custom_call.1}
  #allocation0 [shape = 'u32[]', space=smem, size = 0x4, offset = 0x4, fixed_abs, tag = 'smem constant byte address 0x4 - core index']
  #allocation1 [shape = 'u32[144,128]{1,0:T(1,128)}', space=vmem, size = 0x12000, scoped, tag = 'internal scratch']
  %s0 = inlined_call_operand.vmem [shape: f32[2,48,4], index: 0, kind: input, shape index: {}]
  %s1 = inlined_call_operand.vmem [shape: f32[2,48,4], index: 1, kind: input, shape index: {}]
  %s2 = inlined_call_operand.vmem [shape: f32[3,4,4], index: 2, kind: input, shape index: {}]
  %s3 = inlined_call_operand.vmem [shape: f32[2,5,2,4], index: 3, kind: output, shape index: {}]
  %s4 = sld [smem:[#allocation0]]
  $region45: #{tpu_custom_call.1} parent=0
    _
  %s6 = ssub.s32 1, %s4
  %s7 = scalar_select 0, %s6, %s4
  loop: start=0, step=1, limit=12
  $region2: #{tpu_custom_call.1} parent=0 // loop_pre_header
    _
  $region3: #{tpu_custom_call.1} parent=0 // loop_header
    %s9 = sphi 0, %s13
    %p10 = scmp.ge.s32.totalorder %s9, 12
    %s16 = sphi 0, %s28
    %s17 = sphi 0, %s24
    %s18 = sphi 0, %s16
    %s19 = sphi 0, %s17
    %s20 = sphi 0, %s18
    %s21 = sphi 0, %s19
    %s33 = sphi 0, %s35
    %s36 = sphi 0, %s33
    %s37 = sphi 0, %s36
    %s53 = sphi 0, %s37
    %s63 = sphi 0, %s65
    %s66 = sphi 0, %s63
    %s67 = sphi 0, %s66
    %s83 = sphi 0, %s67
    %s87 = sphi 0, %s87
    %s89 = sphi 0, %s87
    %s90 = sphi 0, %s89
    %s104 = sphi 0, %s90
    %s112 = sphi 0, %s114
    %s115 = sphi 0, %s112
    %s116 = sphi 0, %s115
    %s132 = sphi 0, %s116
  $region4: #{tpu_custom_call.1} parent=0 // loop_header_branch
    %12 = sbr.rel (%p10) target = $region8
  $region5: #{tpu_custom_call.1} parent=0 // loop_body
    %s14 = ssub.s32 %s9, 1
    %s15 = ssub.s32 %s9, 2
    %s22 = sadd.s32 1, %s17
    %p23 = scmp.ge.s32.totalorder %s22, 5
    %s24 = scalar_select %p23, 0, %s22
    %s25 = sadd.s32 1, %s16
    %s26 = scalar_select %p23, %s25, %s16
    %p27 = scmp.ge.s32.totalorder %s26, 2
    %s28 = scalar_select %p27, 0, %s26
    %s29 = ssub.s32 %s16, %s28
    %s30 = ssub.s32 %s17, %s24
    %s31 = sor.u32 %s29, %s30
    %p32 = scmp.eq.s32.totalorder %s31, 0
    %s34 = sadd.s32 %s33, 1
    %s35 = scalar_select %p32, %s33, %s34
    %p38 = pneg %p32
    %p39 = scmp.eq.s32.totalorder %s9, 9
    %p40 = por %p38, %p39
    %p41 = scmp.ne.s32.totalorder %s33, %s36
    %p42 = scmp.eq.s32.totalorder %s9, 0
    %p43 = por %p41, %p42
    %p44 = scmp.ne.s32.totalorder %s33, %s36
    %p45 = scmp.eq.s32.totalorder %s14, 9
    %p46 = por %p44, %p45
    %p47 = scmp.ne.s32.totalorder %s36, %s37
    %p48 = scmp.eq.s32.totalorder %s14, 0
    %p49 = por %p47, %p48
    %p50 = scmp.ne.s32.totalorder %s36, %s37
    %p51 = scmp.eq.s32.totalorder %s15, 9
    %p52 = por %p50, %p51
    %p54 = scmp.ne.s32.totalorder %s37, %s53
    %p55 = scmp.eq.s32.totalorder %s15, 0
    %p56 = por %p54, %p55
    %s57 = sadd.s32 %s17, 1
    %s58 = sadd.s32 %s24, 1
    %s59 = ssub.s32 %s16, %s28
    %s60 = ssub.s32 %s57, %s58
    %s61 = sor.u32 %s59, %s60
    %p62 = scmp.eq.s32.totalorder %s61, 0
    %s64 = sadd.s32 %s63, 1
    %s65 = scalar_select %p62, %s63, %s64
    %p68 = pneg %p62
    %p69 = scmp.eq.s32.totalorder %s9, 9
    %p70 = por %p68, %p69
    %p71 = scmp.ne.s32.totalorder %s63, %s66
    %p72 = scmp.eq.s32.totalorder %s9, 0
    %p73 = por %p71, %p72
    %p74 = scmp.ne.s32.totalorder %s63, %s66
    %p75 = scmp.eq.s32.totalorder %s14, 9
    %p76 = por %p74, %p75
    %p77 = scmp.ne.s32.totalorder %s66, %s67
    %p78 = scmp.eq.s32.totalorder %s14, 0
    %p79 = por %p77, %p78
    %p80 = scmp.ne.s32.totalorder %s66, %s67
    %p81 = scmp.eq.s32.totalorder %s15, 9
    %p82 = por %p80, %p81
    %p84 = scmp.ne.s32.totalorder %s67, %s83
    %p85 = scmp.eq.s32.totalorder %s15, 0
    %p86 = por %p84, %p85
    %s88 = sadd.s32 %s87, 1
    %p91 = scmp.eq.s32.totalorder %s9, 9
    %p92 = scmp.ne.s32.totalorder %s87, %s89
    %p93 = scmp.eq.s32.totalorder %s9, 0
    %p94 = por %p92, %p93
    %p95 = scmp.ne.s32.totalorder %s87, %s89
    %p96 = scmp.eq.s32.totalorder %s14, 9
    %p97 = por %p95, %p96
    %p98 = scmp.ne.s32.totalorder %s89, %s90
    %p99 = scmp.eq.s32.totalorder %s14, 0
    %p100 = por %p98, %p99
    %p101 = scmp.ne.s32.totalorder %s89, %s90
    %p102 = scmp.eq.s32.totalorder %s15, 9
    %p103 = por %p101, %p102
    %p105 = scmp.ne.s32.totalorder %s90, %s104
    %p106 = scmp.eq.s32.totalorder %s15, 0
    %p107 = por %p105, %p106
    %s108 = ssub.s32 %s16, %s28
    %s109 = ssub.s32 %s17, %s24
    %s110 = sor.u32 %s108, %s109
    %p111 = scmp.eq.s32.totalorder %s110, 0
    %s113 = sadd.s32 %s112, 1
    %s114 = scalar_select %p111, %s112, %s113
    %p117 = pneg %p111
    %p118 = scmp.eq.s32.totalorder %s9, 9
    %p119 = por %p117, %p118
    %p120 = scmp.ne.s32.totalorder %s112, %s115
    %p121 = scmp.eq.s32.totalorder %s9, 0
    %p122 = por %p120, %p121
    %p123 = scmp.ne.s32.totalorder %s112, %s115
    %p124 = scmp.eq.s32.totalorder %s14, 9
    %p125 = por %p123, %p124
    %p126 = scmp.ne.s32.totalorder %s115, %s116
    %p127 = scmp.eq.s32.totalorder %s14, 0
    %p128 = por %p126, %p127
    %p129 = scmp.ne.s32.totalorder %s115, %s116
    %p130 = scmp.eq.s32.totalorder %s15, 9
    %p131 = por %p129, %p130
    %p133 = scmp.ne.s32.totalorder %s116, %s132
    %p134 = scmp.eq.s32.totalorder %s15, 0
    %p135 = por %p133, %p134
    %p136 = scmp.le.s32.totalorder 1, %s9
    %p137 = scmp.lt.s32.totalorder %s9, 11
    %p138 = pnand %p136, %p137
    %p139 = pneg %p138
    // Predicated region
    $region9: #{tpu_custom_call.1} parent=5 // pred_check
      _
    $region10: #{tpu_custom_call.1} parent=5 // pred_check_branch
      %141 = sbr.rel (%p138) target = $region12
    $region11: #{tpu_custom_call.1} parent=5 // pred_region
      %s142 = ssub.s32 %s9, 1
      // Predicated region
      $region13: #{tpu_custom_call.1} parent=11 // pred_check
        %p143 = pneg %p100
      $region14: #{tpu_custom_call.1} parent=11 // pred_check_branch
        %145 = sbr.rel (%p143) target = $region16
      $region15: #{tpu_custom_call.1} parent=11 // pred_region
        _
      $region16: #{tpu_custom_call.1} parent=11 // pred_fallthru
        _
    $region12: #{tpu_custom_call.1} parent=5 // pred_fallthru
      _
    %p146 = scmp.lt.s32.totalorder %s9, 10
    // Predicated region
    $region17: #{tpu_custom_call.1} parent=5 // pred_check
      %p147 = pneg %p146
    $region18: #{tpu_custom_call.1} parent=5 // pred_check_branch
      %149 = sbr.rel (%p147) target = $region20
    $region19: #{tpu_custom_call.1} parent=5 // pred_region
      // Predicated region
      $region21: #{tpu_custom_call.1} parent=19 // pred_check
        %p150 = pneg %p43
      $region22: #{tpu_custom_call.1} parent=19 // pred_check_branch
        %152 = sbr.rel (%p150) target = $region24
      $region23: #{tpu_custom_call.1} parent=19 // pred_region
        %p153 = scmp.lt.s32.totalorder %s16, 1
        %s154 = scalar_select %p153, %s16, 1
        %p155 = scmp.lt.s32.totalorder %s17, 5
        %s156 = scalar_select %p155, %s17, 5
        %s157 = smul.addr %s154, 6
        %s158 = sadd.s32 %s156, %s157
        %s159 = smul.addr %s158, 8
        %s160 = scalar_lea.vmem %s0, %s159
      $region24: #{tpu_custom_call.1} parent=19 // pred_fallthru
        _
      // Predicated region
      $region25: #{tpu_custom_call.1} parent=19 // pred_check
        %p161 = pneg %p73
      $region26: #{tpu_custom_call.1} parent=19 // pred_check_branch
        %163 = sbr.rel (%p161) target = $region28
      $region27: #{tpu_custom_call.1} parent=19 // pred_region
        %s164 = sadd.s32 %s17, 1
        %p165 = scmp.lt.s32.totalorder %s16, 1
        %s166 = scalar_select %p165, %s16, 1
        %p167 = scmp.lt.s32.totalorder %s164, 5
        %s168 = scalar_select %p167, %s164, 5
        %s169 = smul.addr %s166, 6
        %s170 = sadd.s32 %s168, %s169
        %s171 = smul.addr %s170, 8
        %s172 = scalar_lea.vmem %s1, %s171
        %s173 = sadd.s32 %s17, 1
      $region28: #{tpu_custom_call.1} parent=19 // pred_fallthru
        _
    $region20: #{tpu_custom_call.1} parent=5 // pred_fallthru
      _
    %p174 = scmp.le.s32.totalorder 1, %s9
    %p175 = scmp.lt.s32.totalorder %s9, 11
    %p176 = pnand %p174, %p175
    %p177 = pneg %p176
    // Predicated region
    $region29: #{tpu_custom_call.1} parent=5 // pred_check
      _
    $region30: #{tpu_custom_call.1} parent=5 // pred_check_branch
      %179 = sbr.rel (%p176) target = $region32
    $region31: #{tpu_custom_call.1} parent=5 // pred_region
      %s180 = ssub.s32 %s9, 1
      %p181 = scmp.lt.s32.totalorder %s18, 1
      %s182 = scalar_select %p181, %s18, 1
      %p183 = scmp.lt.s32.totalorder %s19, 5
      %s184 = scalar_select %p183, %s19, 5
      %s185 = smul.addr %s182, 6
      %s186 = sadd.s32 %s184, %s185
      %s187 = smul.addr %s186, 8
      %s188 = scalar_lea.vmem %s0, %s187
      %p189 = pneg %p49
      %p190 = pneg %p46
      %s191 = sadd.s32 %s19, 1
      %p192 = scmp.lt.s32.totalorder %s18, 1
      %s193 = scalar_select %p192, %s18, 1
      %p194 = scmp.lt.s32.totalorder %s191, 5
      %s195 = scalar_select %p194, %s191, 5
      %s196 = smul.addr %s193, 6
      %s197 = sadd.s32 %s195, %s196
      %s198 = smul.addr %s197, 8
      %s199 = scalar_lea.vmem %s1, %s198
      %p200 = pneg %p79
      %p201 = pneg %p76
      %p202 = pneg %p100
      %p203 = pneg %p97
      %p204 = pneg %p128
      %p205 = pneg %p125
      %p206 = scmp.lt.s32.totalorder %s18, 1
      %s207 = scalar_select %p206, %s18, 1
      %p208 = scmp.lt.s32.totalorder %s19, 4
      %s209 = scalar_select %p208, %s19, 4
      %s210 = smul.addr %s207, 5
      %s211 = sadd.s32 %s209, %s210
      %s212 = smul.addr %s211, 2
      %s213 = scalar_lea.vmem %s3, %s212
      %p214 = scmp.lt.s32.totalorder %s18, 1
      %s215 = scalar_select %p214, %s18, 1
      %p216 = scmp.lt.s32.totalorder %s19, 5
      %s217 = scalar_select %p216, %s19, 5
      %s218 = smul.addr %s215, 6
      %s219 = sadd.s32 %s217, %s218
      %s220 = smul.addr %s219, 8
      %s221 = scalar_lea.vmem %s0, %s220
      %s222 = sadd.s32 %s19, 1
      %p223 = scmp.lt.s32.totalorder %s18, 1
      %s224 = scalar_select %p223, %s18, 1
      %p225 = scmp.lt.s32.totalorder %s222, 5
      %s226 = scalar_select %p225, %s222, 5
      %s227 = smul.addr %s224, 6
      %s228 = sadd.s32 %s226, %s227
      %s229 = smul.addr %s228, 8
      %s230 = scalar_lea.vmem %s1, %s229
      %s231 = sadd.s32 %s19, 1
      %p232 = scmp.lt.s32.totalorder %s18, 1
      %s233 = scalar_select %p232, %s18, 1
      %p234 = scmp.lt.s32.totalorder %s19, 4
      %s235 = scalar_select %p234, %s19, 4
      %s236 = smul.addr %s233, 5
      %s237 = sadd.s32 %s235, %s236
      %s238 = smul.addr %s237, 2
      %s239 = scalar_lea.vmem %s3, %s238
      %v240 = vld [vmem:[%s221] sm:$0xff]
      %v241 = vld [vmem:[%s230] sm:$0xff]
      %v242 = vld [vmem:[%s2] sm:$0xf]
      %s243 = scalar_lea.vmem %s2, 4
      %v244 = vld [vmem:[%s243] sm:$0xf]
      %vm247 = vcmask 1043456
      %v248 = vrot.slane %v240, 4
      %v249 = vrot.slane %v241, 4
      %v250 = vsel %vm247, %v248, %v249
      %vm251 = vcmask 31744
      %v252 = vsel %vm251, %v250, 0
      %v255 = vsel %vm247, %v244, 0
      %257 = vmatprep.subr.mxu0 0.0
      %258 = vmatpush1.msra.mxu0 0.0
      %259 = vmatprep.subr.mxu0 0.0
      %260 = vmatpush1.msra.mxu0 0.0
      %261 = vmatprep.subr.mxu0 0.0
      %262 = vmatpush1.msra.mxu0 0.0
      %263 = vmatprep.subr.mxu0 0.0
      %264 = vmatpush1.msra.mxu0 0.0
      %265 = vmatprep.subr.mxu0 0.0
      %266 = vmatpush1.msra.mxu0 0.0
      %267 = vmatprep.subr.mxu0 0.0
      %268 = vmatpush1.msra.mxu0 0.0
      %269 = vmatprep.subr.mxu0 0.0
      %270 = vmatpush1.msra.mxu0 0.0
      %271 = vmatprep.subr.mxu0 0.0
      %272 = vmatpush1.msra.mxu0 0.0
      %273 = vmatprep.subr.mxu0 0.0
      %274 = vmatpush1.msra.mxu0 0.0
      %275 = vmatprep.subr.mxu0 0.0
      %276 = vmatpush1.msra.mxu0 0.0
      %277 = vmatprep.subr.mxu0 0.0
      %278 = vmatpush1.msra.mxu0 0.0
      %279 = vmatprep.subr.mxu0 0.0
      %280 = vmatpush1.msra.mxu0 0.0
      %281 = vmatprep.subr.mxu0 0.0
      %282 = vmatpush1.msra.mxu0 0.0
      %283 = vmatprep.subr.mxu0 0.0
      %284 = vmatpush1.msra.mxu0 0.0
      %285 = vmatprep.subr.mxu0 0.0
      %286 = vmatpush1.msra.mxu0 0.0
      %287 = vmatprep.subr.mxu0 0.0
      %288 = vmatpush1.msra.mxu0 %v255
      %289 = vmatprep.subr.mxu0 0.0
      %290 = vmatpush2.msra.mxu0 0.0
      %291 = vmatprep.subr.mxu0 0.0
      %292 = vmatpush2.msra.mxu0 0.0
      %293 = vmatprep.subr.mxu0 0.0
      %294 = vmatpush2.msra.mxu0 0.0
      %295 = vmatprep.subr.mxu0 0.0
      %296 = vmatpush2.msra.mxu0 0.0
      %297 = vmatprep.subr.mxu0 0.0
      %298 = vmatpush2.msra.mxu0 0.0
      %299 = vmatprep.subr.mxu0 0.0
      %300 = vmatpush2.msra.mxu0 0.0
      %301 = vmatprep.subr.mxu0 0.0
      %302 = vmatpush2.msra.mxu0 0.0
      %303 = vmatprep.subr.mxu0 0.0
      %304 = vmatpush2.msra.mxu0 0.0
      %305 = vmatprep.subr.mxu0 0.0
      %306 = vmatpush2.msra.mxu0 0.0
      %307 = vmatprep.subr.mxu0 0.0
      %308 = vmatpush2.msra.mxu0 0.0
      %309 = vmatprep.subr.mxu0 0.0
      %310 = vmatpush2.msra.mxu0 0.0
      %311 = vmatprep.subr.mxu0 0.0
      %312 = vmatpush2.msra.mxu0 0.0
      %313 = vmatprep.subr.mxu0 0.0
      %314 = vmatpush2.msra.mxu0 0.0
      %315 = vmatprep.subr.mxu0 0.0
      %316 = vmatpush2.msra.mxu0 0.0
      %317 = vmatprep.subr.mxu0 0.0
      %318 = vmatpush2.msra.mxu0 0.0
      %319 = vmatprep.subr.mxu0 0.0
      %320 = vmatpush2.msra.mxu0 0.0
      %321 = vmatprep.mubr.f32.mxu0 0.0
      %322 = vmatmul.mubr.f32.gmra.mxu0 %v252
      %v323 = vpop.f32.mrf.mxu0
      %v324 = vadd.f32 0.0, %v323
      %v325 = vpop.f32.mrf.mxu0
      %326 = vdwg.mxu0
      %vm327 = vcmask 1045504
      %v328 = vrot.slane %v240, 2
      %v329 = vrot.slane %v241, 2
      %v330 = vsel %vm327, %v328, %v329
      %v331 = vsel %vm251, %v330, 0
      %v334 = vsel %vm247, %v242, 0
      %336 = vmatprep.subr.mxu0 0.0
      %337 = vmatpush1.msra.mxu0 0.0
      %338 = vmatprep.subr.mxu0 0.0
      %339 = vmatpush1.msra.mxu0 0.0
      %340 = vmatprep.subr.mxu0 0.0
      %341 = vmatpush1.msra.mxu0 0.0
      %342 = vmatprep.subr.mxu0 0.0
      %343 = vmatpush1.msra.mxu0 0.0
      %344 = vmatprep.subr.mxu0 0.0
      %345 = vmatpush1.msra.mxu0 0.0
      %346 = vmatprep.subr.mxu0 0.0
      %347 = vmatpush1.msra.mxu0 0.0
      %348 = vmatprep.subr.mxu0 0.0
      %349 = vmatpush1.msra.mxu0 0.0
      %350 = vmatprep.subr.mxu0 0.0
      %351 = vmatpush1.msra.mxu0 0.0
      %352 = vmatprep.subr.mxu0 0.0
      %353 = vmatpush1.msra.mxu0 0.0
      %354 = vmatprep.subr.mxu0 0.0
      %355 = vmatpush1.msra.mxu0 0.0
      %356 = vmatprep.subr.mxu0 0.0
      %357 = vmatpush1.msra.mxu0 0.0
      %358 = vmatprep.subr.mxu0 0.0
      %359 = vmatpush1.msra.mxu0 0.0
      %360 = vmatprep.subr.mxu0 0.0
      %361 = vmatpush1.msra.mxu0 0.0
      %362 = vmatprep.subr.mxu0 0.0
      %363 = vmatpush1.msra.mxu0 0.0
      %364 = vmatprep.subr.mxu0 0.0
      %365 = vmatpush1.msra.mxu0 0.0
      %366 = vmatprep.subr.mxu0 0.0
      %367 = vmatpush1.msra.mxu0 %v334
      %368 = vmatprep.subr.mxu0 0.0
      %369 = vmatpush2.msra.mxu0 0.0
      %370 = vmatprep.subr.mxu0 0.0
      %371 = vmatpush2.msra.mxu0 0.0
      %372 = vmatprep.subr.mxu0 0.0
      %373 = vmatpush2.msra.mxu0 0.0
      %374 = vmatprep.subr.mxu0 0.0
      %375 = vmatpush2.msra.mxu0 0.0
      %376 = vmatprep.subr.mxu0 0.0
      %377 = vmatpush2.msra.mxu0 0.0
      %378 = vmatprep.subr.mxu0 0.0
      %379 = vmatpush2.msra.mxu0 0.0
      %380 = vmatprep.subr.mxu0 0.0
      %381 = vmatpush2.msra.mxu0 0.0
      %382 = vmatprep.subr.mxu0 0.0
      %383 = vmatpush2.msra.mxu0 0.0
      %384 = vmatprep.subr.mxu0 0.0
      %385 = vmatpush2.msra.mxu0 0.0
      %386 = vmatprep.subr.mxu0 0.0
      %387 = vmatpush2.msra.mxu0 0.0
      %388 = vmatprep.subr.mxu0 0.0
      %389 = vmatpush2.msra.mxu0 0.0
      %390 = vmatprep.subr.mxu0 0.0
      %391 = vmatpush2.msra.mxu0 0.0
      %392 = vmatprep.subr.mxu0 0.0
      %393 = vmatpush2.msra.mxu0 0.0
      %394 = vmatprep.subr.mxu0 0.0
      %395 = vmatpush2.msra.mxu0 0.0
      %396 = vmatprep.subr.mxu0 0.0
      %397 = vmatpush2.msra.mxu0 0.0
      %398 = vmatprep.subr.mxu0 0.0
      %399 = vmatpush2.msra.mxu0 0.0
      %400 = vmatprep.mubr.f32.mxu0 0.0
      %401 = vmatmul.mubr.f32.gmra.mxu0 %v331
      %v402 = vpop.f32.mrf.mxu0
      %v403 = vadd.f32 %v324, %v402
      %v404 = vpop.f32.mrf.mxu0
      %405 = vdwg.mxu0
      %s406 = scalar_lea.vmem %s2, 8
      %v407 = vld [vmem:[%s406] sm:$0xf]
      %vm408 = vcmask 1041408
      %v409 = vrot.slane %v240, 6
      %v410 = vrot.slane %v241, 6
      %v411 = vsel %vm408, %v409, %v410
      %v412 = vsel %vm251, %v411, 0
      %v415 = vsel %vm247, %v407, 0
      %417 = vmatprep.subr.mxu0 0.0
      %418 = vmatpush1.msra.mxu0 0.0
      %419 = vmatprep.subr.mxu0 0.0
      %420 = vmatpush1.msra.mxu0 0.0
      %421 = vmatprep.subr.mxu0 0.0
      %422 = vmatpush1.msra.mxu0 0.0
      %423 = vmatprep.subr.mxu0 0.0
      %424 = vmatpush1.msra.mxu0 0.0
      %425 = vmatprep.subr.mxu0 0.0
      %426 = vmatpush1.msra.mxu0 0.0
      %427 = vmatprep.subr.mxu0 0.0
      %428 = vmatpush1.msra.mxu0 0.0
      %429 = vmatprep.subr.mxu0 0.0
      %430 = vmatpush1.msra.mxu0 0.0
      %431 = vmatprep.subr.mxu0 0.0
      %432 = vmatpush1.msra.mxu0 0.0
      %433 = vmatprep.subr.mxu0 0.0
      %434 = vmatpush1.msra.mxu0 0.0
      %435 = vmatprep.subr.mxu0 0.0
      %436 = vmatpush1.msra.mxu0 0.0
      %437 = vmatprep.subr.mxu0 0.0
      %438 = vmatpush1.msra.mxu0 0.0
      %439 = vmatprep.subr.mxu0 0.0
      %440 = vmatpush1.msra.mxu0 0.0
      %441 = vmatprep.subr.mxu0 0.0
      %442 = vmatpush1.msra.mxu0 0.0
      %443 = vmatprep.subr.mxu0 0.0
      %444 = vmatpush1.msra.mxu0 0.0
      %445 = vmatprep.subr.mxu0 0.0
      %446 = vmatpush1.msra.mxu0 0.0
      %447 = vmatprep.subr.mxu0 0.0
      %448 = vmatpush1.msra.mxu0 %v415
      %449 = vmatprep.subr.mxu0 0.0
      %450 = vmatpush2.msra.mxu0 0.0
      %451 = vmatprep.subr.mxu0 0.0
      %452 = vmatpush2.msra.mxu0 0.0
      %453 = vmatprep.subr.mxu0 0.0
      %454 = vmatpush2.msra.mxu0 0.0
      %455 = vmatprep.subr.mxu0 0.0
      %456 = vmatpush2.msra.mxu0 0.0
      %457 = vmatprep.subr.mxu0 0.0
      %458 = vmatpush2.msra.mxu0 0.0
      %459 = vmatprep.subr.mxu0 0.0
      %460 = vmatpush2.msra.mxu0 0.0
      %461 = vmatprep.subr.mxu0 0.0
      %462 = vmatpush2.msra.mxu0 0.0
      %463 = vmatprep.subr.mxu0 0.0
      %464 = vmatpush2.msra.mxu0 0.0
      %465 = vmatprep.subr.mxu0 0.0
      %466 = vmatpush2.msra.mxu0 0.0
      %467 = vmatprep.subr.mxu0 0.0
      %468 = vmatpush2.msra.mxu0 0.0
      %469 = vmatprep.subr.mxu0 0.0
      %470 = vmatpush2.msra.mxu0 0.0
      %471 = vmatprep.subr.mxu0 0.0
      %472 = vmatpush2.msra.mxu0 0.0
      %473 = vmatprep.subr.mxu0 0.0
      %474 = vmatpush2.msra.mxu0 0.0
      %475 = vmatprep.subr.mxu0 0.0
      %476 = vmatpush2.msra.mxu0 0.0
      %477 = vmatprep.subr.mxu0 0.0
      %478 = vmatpush2.msra.mxu0 0.0
      %479 = vmatprep.subr.mxu0 0.0
      %480 = vmatpush2.msra.mxu0 0.0
      %481 = vmatprep.mubr.f32.mxu0 0.0
      %482 = vmatmul.mubr.f32.gmra.mxu0 %v412
      %v483 = vpop.f32.mrf.mxu0
      %v484 = vadd.f32 0.0, %v483
      %v485 = vpop.f32.mrf.mxu0
      %486 = vdwg.mxu0
      %v487 = vadd.f32 %v403, %v484
      %s488 = smul.u32 %s19, 8
      %v489 = vlaneseq
      %v490 = vshrl.u32 %v489, 7
      %v491 = vstv %s488
      %v492 = vadd.s32 %v491, %v490
      %vm493 = vcmp.lt.s32.totalorder %v492, 37
      %v494 = vsel %vm493, 1, 0
      %vm495 = vcmp.eq.s32.totalorder %v494, 1
      %v496 = vsel %vm495, %v487, 0.0
      %v497 = vsel %vm251, %v496, 0.0
      %v498 = vrot.slane %v497, 4
      %v499 = vadd.f32 %v497, %v498
      %v500 = vrot.slane %v499, 2
      %v501 = vadd.f32 %v499, %v500
      %v502 = vrot.slane %v501, 1
      %v503 = vadd.f32 %v501, %v502
      %v504 = vmul.f32 %v496, %v496
      %v505 = vsel %vm251, %v504, 0.0
      %v506 = vrot.slane %v505, 4
      %v507 = vadd.f32 %v505, %v506
      %v508 = vrot.slane %v507, 2
      %v509 = vadd.f32 %v507, %v508
      %v510 = vrot.slane %v509, 1
      %v511 = vadd.f32 %v509, %v510
      %vm512 = vcmask 1040384
      %v513 = vsel %vm512, %v503, %v511
      %vm514 = vcmask 25600
      %515 = vst.msk [vmem:[%s239] sm:$0x3] %vm514, %v513
      %p516 = scmp.lt.s32.totalorder %s18, 1
      %s517 = scalar_select %p516, %s18, 1
      %p518 = scmp.lt.s32.totalorder %s19, 4
      %s519 = scalar_select %p518, %s19, 4
      %s520 = smul.addr %s517, 5
      %s521 = sadd.s32 %s519, %s520
      %s522 = smul.addr %s521, 2
      %s523 = scalar_lea.vmem %s3, %s522
      // Predicated region
      $region33: #{tpu_custom_call.1} parent=31 // pred_check
        %p524 = pneg %p125
      $region34: #{tpu_custom_call.1} parent=31 // pred_check_branch
        %526 = sbr.rel (%p524) target = $region36
      $region35: #{tpu_custom_call.1} parent=31 // pred_region
        _
      $region36: #{tpu_custom_call.1} parent=31 // pred_fallthru
        _
    $region32: #{tpu_custom_call.1} parent=5 // pred_fallthru
      _
    %p527 = scmp.le.s32.totalorder 2, %s9
    // Predicated region
    $region37: #{tpu_custom_call.1} parent=5 // pred_check
      %p528 = pneg %p527
    $region38: #{tpu_custom_call.1} parent=5 // pred_check_branch
      %530 = sbr.rel (%p528) target = $region40
    $region39: #{tpu_custom_call.1} parent=5 // pred_region
      %s531 = ssub.s32 %s9, 2
      // Predicated region
      $region41: #{tpu_custom_call.1} parent=39 // pred_check
        %p532 = pneg %p131
      $region42: #{tpu_custom_call.1} parent=39 // pred_check_branch
        %534 = sbr.rel (%p532) target = $region44
      $region43: #{tpu_custom_call.1} parent=39 // pred_region
        %p535 = scmp.lt.s32.totalorder %s20, 1
        %s536 = scalar_select %p535, %s20, 1
        %p537 = scmp.lt.s32.totalorder %s21, 4
        %s538 = scalar_select %p537, %s21, 4
        %s539 = smul.addr %s536, 5
        %s540 = sadd.s32 %s538, %s539
        %s541 = smul.addr %s540, 2
        %s542 = scalar_lea.vmem %s3, %s541
      $region44: #{tpu_custom_call.1} parent=39 // pred_fallthru
        _
    $region40: #{tpu_custom_call.1} parent=5 // pred_fallthru
      _
  $region6: #{tpu_custom_call.1} parent=0 // loop_footer
    %s13 = sadd.s32 1, %s9
  $region7: #{tpu_custom_call.1} parent=0 // loop_footer_branch
    %8 = sbr.rel target = $region3
  $region8: #{tpu_custom_call.1} parent=0 // loop_exit
    _

</llo_original>
